<compile_context>
chip_gen: v5e
topology: v5e:2x2
jax: 0.10.0
libtpu: 0.0.40
codegen_flags: <defaults>
</compile_context>

<pallas_src>
import functools

import jax
import jax.numpy as jnp
from jax.experimental import pallas as pl
from jax.experimental.pallas import tpu as pltpu

_LANE = 128
_SUBLANE = 8


def _round_up(x, m):
    return (x + m - 1) // m * m


def _pad2d(a, rows, cols):
    r, c = a.shape
    if r == rows and c == cols:
        return a
    return jnp.pad(a, ((0, rows - r), (0, cols - c)))


def _pick_block_batch(b):
    """Row-tile heuristic: never shrink M below full MXU height to force grid steps."""
    b_pad = _round_up(b, _SUBLANE)
    if b_pad < 512:
        # One tile. Splitting here only adds serial grid steps (v5e/v6e are
        # single-TC) and half-fills the 256-row MXU on v6e/v7x.
        return b_pad
    # >= 512 rows: split into 256-row-aligned tiles (>=2 "parallel" steps for
    # v7x megacore, each still full MXU height); cap at 1024 rows for VMEM.
    return max(256, min(1024, (b_pad // 2) // 256 * 256))


@functools.lru_cache(maxsize=None)
def _vmem_limit_bytes():
    """Per-generation scoped-VMEM cap with ~25% headroom for compiler scratch."""
    try:
        cap = pltpu.get_tpu_info().vmem_capacity_bytes  # 128 MiB v5e/v6e, 64 MiB v7x
    except Exception:
        cap = 64 * 1024 * 1024  # capability probe only; safe conservative fallback
    return int(cap * 3 // 4)


def expert_kernel(x_ref, w1_ref, b1_ref, w2_ref, b2_ref, w3_ref, b3_ref,
                  o_ref, *, out_valid):
    # x arrives f32 from HBM; cast to bf16 on the VPU (free next to the MXU).
    x = x_ref[...].astype(jnp.bfloat16)

    # Layer 1: bf16 MXU matmul, f32 accumulate; bias + ReLU in f32, then the
    # intermediate is kept only in bf16 (no duplicate f32 copy in VMEM/vregs).
    h1 = jnp.dot(x, w1_ref[...], preferred_element_type=jnp.float32)
    h1 = jnp.maximum(h1 + b1_ref[...], 0.0).astype(jnp.bfloat16)

    # Layer 2.
    h2 = jnp.dot(h1, w2_ref[...], preferred_element_type=jnp.float32)
    h2 = jnp.maximum(h2 + b2_ref[...], 0.0).astype(jnp.bfloat16)

    # Layer 3 + softmax over the (lane-padded) feature axis, all in f32.
    logits = jnp.dot(h2, w3_ref[...], preferred_element_type=jnp.float32)
    logits = logits + b3_ref[...]

    out_pad = logits.shape[-1]
    if out_valid != out_pad:
        # Mask zero-padded output columns so they don't leak into the softmax.
        col = jax.lax.broadcasted_iota(jnp.int32, logits.shape, 1)
        logits = jnp.where(col < out_valid, logits, -1e30)

    m = jnp.max(logits, axis=-1, keepdims=True)
    e = jnp.exp(logits - m)
    denom = jnp.sum(e, axis=-1, keepdims=True)
    # Exact f32 divide: the EUP/VPU work sits off the MXU critical path, and
    # downstream consumers get rows that sum to 1 to f32 precision.
    o_ref[...] = (e / denom).astype(o_ref.dtype)


def prepare_expert_params(params):
    """Pad feature dims to 128 lanes and cast weights to bf16 ONCE (persistent).

    params: dict of [in, out] weights and [1, out] biases (f32).
    Returns (weights_dict, (input_dim, hidden_dim, output_dim)).
    """
    input_dim, hidden_dim = params["w1"].shape
    output_dim = params["w3"].shape[1]
    in_pad = _round_up(input_dim, _LANE)
    hid_pad = _round_up(hidden_dim, _LANE)
    out_pad = _round_up(output_dim, _LANE)
    weights = {
        "w1": _pad2d(params["w1"], in_pad, hid_pad).astype(jnp.bfloat16),
        "b1": _pad2d(params["b1"], 1, hid_pad).astype(jnp.float32),
        "w2": _pad2d(params["w2"], hid_pad, hid_pad).astype(jnp.bfloat16),
        "b2": _pad2d(params["b2"], 1, hid_pad).astype(jnp.float32),
        "w3": _pad2d(params["w3"], hid_pad, out_pad).astype(jnp.bfloat16),
        "b3": _pad2d(params["b3"], 1, out_pad).astype(jnp.float32),
    }
    return weights, (input_dim, hidden_dim, output_dim)


@functools.partial(jax.jit, static_argnums=(2,))
def _expert_forward_jit(x, w, dims):
    input_dim, hidden_dim, output_dim = dims
    B, x_in = x.shape
    assert x_in == input_dim, (x_in, input_dim)

    in_pad, hid_pad = w["w1"].shape
    out_pad = w["w3"].shape[1]

    block_batch = _pick_block_batch(B)
    b_pad = _round_up(B, block_batch)
    grid = (b_pad // block_batch,)

    # x stays f32; the pad fuses inside this jit and the kernel does the cast.
    xp = _pad2d(x, b_pad, in_pad)

    kernel = functools.partial(expert_kernel, out_valid=output_dim)

    flops = 2 * b_pad * (in_pad * hid_pad + hid_pad * hid_pad + hid_pad * out_pad)
    bytes_accessed = (
        b_pad * in_pad * 4
        + (w["w1"].size + w["w2"].size + w["w3"].size) * 2
        + (w["b1"].size + w["b2"].size + w["b3"].size) * 4
        + b_pad * out_pad * 4
    )
    cost = pl.CostEstimate(flops=flops, transcendentals=b_pad * out_pad,
                           bytes_accessed=bytes_accessed)

    def wspec(shape):
        # Grid-invariant operands: index_map always (0, 0) -> DMA'd once.
        return pl.BlockSpec(shape, lambda i: (0, 0))

    out_padded = pl.pallas_call(
        kernel,
        out_shape=jax.ShapeDtypeStruct((b_pad, out_pad), jnp.float32),
        grid_spec=pltpu.PrefetchScalarGridSpec(
            num_scalar_prefetch=0,
            grid=grid,
            in_specs=[
                pl.BlockSpec((block_batch, in_pad), lambda i: (i, 0)),  # x tile
                wspec((in_pad, hid_pad)),                               # w1
                wspec((1, hid_pad)),                                    # b1
                wspec((hid_pad, hid_pad)),                              # w2
                wspec((1, hid_pad)),                                    # b2
                wspec((hid_pad, out_pad)),                              # w3
                wspec((1, out_pad)),                                    # b3
            ],
            out_specs=pl.BlockSpec((block_batch, out_pad), lambda i: (i, 0)),
        ),
        compiler_params=pltpu.CompilerParams(
            dimension_semantics=("parallel",),
            vmem_limit_bytes=_vmem_limit_bytes(),
        ),
        cost_estimate=cost,
    )(xp, w["w1"], w["b1"], w["w2"], w["b2"], w["w3"], w["b3"])

    return out_padded[:B, :output_dim]


def expert_forward(x, prepared):
    """x: [B, input_dim] float32; prepared: output of prepare_expert_params."""
    weights, dims = prepared
    return _expert_forward_jit(x, weights, dims)


def init_expert_params(key, input_dim, hidden_dim, output_dim):
    """Deterministic synthetic init. Weights stored transposed: [in, out]."""
    k1, k2, k3, k4, k5, k6 = jax.random.split(key, 6)
    s1 = 1.0 / jnp.sqrt(input_dim)
    s2 = 1.0 / jnp.sqrt(hidden_dim)
    return {
        "w1": jax.random.uniform(k1, (input_dim, hidden_dim), jnp.float32, -s1, s1),
        "b1": jax.random.uniform(k2, (1, hidden_dim), jnp.float32, -s1, s1),
        "w2": jax.random.uniform(k3, (hidden_dim, hidden_dim), jnp.float32, -s2, s2),
        "b2": jax.random.uniform(k4, (1, hidden_dim), jnp.float32, -s2, s2),
        "w3": jax.random.uniform(k5, (hidden_dim, output_dim), jnp.float32, -s2, s2),
        "b3": jax.random.uniform(k6, (1, output_dim), jnp.float32, -s2, s2),
    }


def expert_reference(x, p):
    h1 = jnp.maximum(x @ p["w1"] + p["b1"], 0.0)
    h2 = jnp.maximum(h1 @ p["w2"] + p["b2"], 0.0)
    logits = h2 @ p["w3"] + p["b3"]
    return jax.nn.softmax(logits, axis=1)


if __name__ == "__main__":
    batch, input_dim, hidden_dim, output_dim = 8, 32, 64, 16

    key = jax.random.PRNGKey(0)
    kx, kp = jax.random.split(key)
    x = jax.random.normal(kx, (batch, input_dim), dtype=jnp.float32)
    params = init_expert_params(kp, input_dim, hidden_dim, output_dim)
    prepared = prepare_expert_params(params)  # one-time pad + bf16 cast

    out = jax.block_until_ready(expert_forward(x, prepared))

    ref = expert_reference(x, params)
    assert out.shape == (batch, output_dim)
    # bf16 matmul operands -> compare against the f32 reference loosely.
    assert jnp.allclose(out, ref, atol=2e-2, rtol=2e-2), float(
        jnp.max(jnp.abs(out - ref)))
    # Exact f32 softmax divide: rows sum to 1 to f32 precision.
    assert jnp.allclose(jnp.sum(out, axis=1), jnp.ones((batch,)), atol=1e-5)

    print("KERNEL_OK")
</pallas_src>

<mosaic_0001>
module attributes {stable_mosaic.version = 11 : i64} {
  func.func @expert_kernel(%arg0: i32, %arg1: memref<8x128xf32, #tpu.memory_space<vmem>>, %arg2: memref<128x128xbf16, #tpu.memory_space<vmem>>, %arg3: memref<1x128xf32, #tpu.memory_space<vmem>>, %arg4: memref<128x128xbf16, #tpu.memory_space<vmem>>, %arg5: memref<1x128xf32, #tpu.memory_space<vmem>>, %arg6: memref<128x128xbf16, #tpu.memory_space<vmem>>, %arg7: memref<1x128xf32, #tpu.memory_space<vmem>>, %arg8: memref<8x128xf32, #tpu.memory_space<vmem>>) attributes {dimension_semantics = [#tpu.dimension_semantics<parallel>], iteration_bounds = array<i64: 1>, scalar_prefetch = 0 : i64, scratch_operands = 0 : i64, tpu.core_type = #tpu.core_type<tc>, window_params = [{transform_indices = @transform_0, window_bounds = array<i64: 8, 128>}, {pipeline_mode = #tpu.pipeline_mode<synchronous>, transform_indices = @transform_1, window_bounds = array<i64: 128, 128>}, {pipeline_mode = #tpu.pipeline_mode<synchronous>, transform_indices = @transform_2, window_bounds = array<i64: 1, 128>}, {pipeline_mode = #tpu.pipeline_mode<synchronous>, transform_indices = @transform_3, window_bounds = array<i64: 128, 128>}, {pipeline_mode = #tpu.pipeline_mode<synchronous>, transform_indices = @transform_4, window_bounds = array<i64: 1, 128>}, {pipeline_mode = #tpu.pipeline_mode<synchronous>, transform_indices = @transform_5, window_bounds = array<i64: 128, 128>}, {pipeline_mode = #tpu.pipeline_mode<synchronous>, transform_indices = @transform_6, window_bounds = array<i64: 1, 128>}, {transform_indices = @transform_7, window_bounds = array<i64: 8, 128>}]} {
    %c0 = arith.constant 0 : index
    %c0_0 = arith.constant 0 : index
    %0 = vector.load %arg1[%c0, %c0_0] : memref<8x128xf32, #tpu.memory_space<vmem>>, vector<8x128xf32>
    %1 = arith.truncf %0 : vector<8x128xf32> to vector<8x128xbf16>
    %c0_1 = arith.constant 0 : index
    %c0_2 = arith.constant 0 : index
    %2 = vector.load %arg2[%c0_1, %c0_2] : memref<128x128xbf16, #tpu.memory_space<vmem>>, vector<128x128xbf16>
    %cst = arith.constant dense<0.000000e+00> : vector<8x128xf32>
    %3 = tpu.matmul %1, %2, %cst {dimension_numbers = #tpu.dot_dimension_numbers<[1], [0], [0], [1], [0, 0, 1, 1], [], []>} : vector<8x128xbf16>, vector<128x128xbf16>, vector<8x128xf32> -> vector<8x128xf32>
    %c0_3 = arith.constant 0 : index
    %c0_4 = arith.constant 0 : index
    %4 = vector.load %arg3[%c0_3, %c0_4] : memref<1x128xf32, #tpu.memory_space<vmem>>, vector<1x128xf32>
    %5 = vector.broadcast %4 : vector<1x128xf32> to vector<8x128xf32>
    %6 = arith.addf %3, %5 : vector<8x128xf32>
    %cst_5 = arith.constant 0.000000e+00 : f32
    %7 = vector.broadcast %cst_5 : f32 to vector<8x128xf32>
    %8 = arith.maximumf %6, %7 : vector<8x128xf32>
    %9 = arith.truncf %8 : vector<8x128xf32> to vector<8x128xbf16>
    %c0_6 = arith.constant 0 : index
    %c0_7 = arith.constant 0 : index
    %10 = vector.load %arg4[%c0_6, %c0_7] : memref<128x128xbf16, #tpu.memory_space<vmem>>, vector<128x128xbf16>
    %cst_8 = arith.constant dense<0.000000e+00> : vector<8x128xf32>
    %11 = tpu.matmul %9, %10, %cst_8 {dimension_numbers = #tpu.dot_dimension_numbers<[1], [0], [0], [1], [0, 0, 1, 1], [], []>} : vector<8x128xbf16>, vector<128x128xbf16>, vector<8x128xf32> -> vector<8x128xf32>
    %c0_9 = arith.constant 0 : index
    %c0_10 = arith.constant 0 : index
    %12 = vector.load %arg5[%c0_9, %c0_10] : memref<1x128xf32, #tpu.memory_space<vmem>>, vector<1x128xf32>
    %13 = vector.broadcast %12 : vector<1x128xf32> to vector<8x128xf32>
    %14 = arith.addf %11, %13 : vector<8x128xf32>
    %cst_11 = arith.constant 0.000000e+00 : f32
    %15 = vector.broadcast %cst_11 : f32 to vector<8x128xf32>
    %16 = arith.maximumf %14, %15 : vector<8x128xf32>
    %17 = arith.truncf %16 : vector<8x128xf32> to vector<8x128xbf16>
    %c0_12 = arith.constant 0 : index
    %c0_13 = arith.constant 0 : index
    %18 = vector.load %arg6[%c0_12, %c0_13] : memref<128x128xbf16, #tpu.memory_space<vmem>>, vector<128x128xbf16>
    %cst_14 = arith.constant dense<0.000000e+00> : vector<8x128xf32>
    %19 = tpu.matmul %17, %18, %cst_14 {dimension_numbers = #tpu.dot_dimension_numbers<[1], [0], [0], [1], [0, 0, 1, 1], [], []>} : vector<8x128xbf16>, vector<128x128xbf16>, vector<8x128xf32> -> vector<8x128xf32>
    %c0_15 = arith.constant 0 : index
    %c0_16 = arith.constant 0 : index
    %20 = vector.load %arg7[%c0_15, %c0_16] : memref<1x128xf32, #tpu.memory_space<vmem>>, vector<1x128xf32>
    %21 = vector.broadcast %20 : vector<1x128xf32> to vector<8x128xf32>
    %22 = arith.addf %19, %21 : vector<8x128xf32>
    %23 = tpu.iota {dimensions = array<i32: 1>} : vector<8x128xi32>
    %c16_i32 = arith.constant 16 : i32
    %24 = vector.broadcast %c16_i32 : i32 to vector<8x128xi32>
    %25 = arith.cmpi slt, %23, %24 : vector<8x128xi32>
    %cst_17 = arith.constant -1.000000e+30 : f32
    %26 = vector.broadcast %cst_17 : f32 to vector<8x128xf32>
    %27 = arith.select %25, %22, %26 : vector<8x128xi1>, vector<8x128xf32>
    %cst_18 = arith.constant dense<0xFF800000> : vector<8xf32>
    %28 = vector.multi_reduction <maximumf>, %27, %cst_18 [1] : vector<8x128xf32> to vector<8xf32>
    %29 = vector.shape_cast %28 : vector<8xf32> to vector<8x1xf32>
    %30 = vector.broadcast %29 : vector<8x1xf32> to vector<8x128xf32>
    %31 = arith.subf %27, %30 : vector<8x128xf32>
    %32 = math.exp %31 : vector<8x128xf32>
    %cst_19 = arith.constant dense<0.000000e+00> : vector<8xf32>
    %33 = vector.multi_reduction <add>, %32, %cst_19 [1] : vector<8x128xf32> to vector<8xf32>
    %34 = vector.shape_cast %33 : vector<8xf32> to vector<8x1xf32>
    %35 = vector.broadcast %34 : vector<8x1xf32> to vector<8x128xf32>
    %36 = arith.divf %32, %35 : vector<8x128xf32>
    %c0_20 = arith.constant 0 : index
    %c0_21 = arith.constant 0 : index
    %37 = vector.load %arg8[%c0_20, %c0_21] : memref<8x128xf32, #tpu.memory_space<vmem>>, vector<8x128xf32>
    tpu.vector_store %arg8[%c0_20, %c0_21], %36 {strides = array<i32>} : memref<8x128xf32, #tpu.memory_space<vmem>>, vector<8x128xf32>,
    return
  }
  func.func @transform_0(%arg0: i32) -> (i32, i32) {
    %c0_i32 = arith.constant 0 : i32
    %c0_i32_0 = arith.constant 0 : i32
    return %arg0, %c0_i32 : i32, i32
  }
  func.func @transform_1(%arg0: i32) -> (i32, i32) {
    %c0_i32 = arith.constant 0 : i32
    %c0_i32_0 = arith.constant 0 : i32
    %c0_i32_1 = arith.constant 0 : i32
    return %c0_i32, %c0_i32_0 : i32, i32
  }
  func.func @transform_2(%arg0: i32) -> (i32, i32) {
    %c0_i32 = arith.constant 0 : i32
    %c0_i32_0 = arith.constant 0 : i32
    %c0_i32_1 = arith.constant 0 : i32
    return %c0_i32, %c0_i32_0 : i32, i32
  }
  func.func @transform_3(%arg0: i32) -> (i32, i32) {
    %c0_i32 = arith.constant 0 : i32
    %c0_i32_0 = arith.constant 0 : i32
    %c0_i32_1 = arith.constant 0 : i32
    return %c0_i32, %c0_i32_0 : i32, i32
  }
  func.func @transform_4(%arg0: i32) -> (i32, i32) {
    %c0_i32 = arith.constant 0 : i32
    %c0_i32_0 = arith.constant 0 : i32
    %c0_i32_1 = arith.constant 0 : i32
    return %c0_i32, %c0_i32_0 : i32, i32
  }
  func.func @transform_5(%arg0: i32) -> (i32, i32) {
    %c0_i32 = arith.constant 0 : i32
    %c0_i32_0 = arith.constant 0 : i32
    %c0_i32_1 = arith.constant 0 : i32
    return %c0_i32, %c0_i32_0 : i32, i32
  }
  func.func @transform_6(%arg0: i32) -> (i32, i32) {
    %c0_i32 = arith.constant 0 : i32
    %c0_i32_0 = arith.constant 0 : i32
    %c0_i32_1 = arith.constant 0 : i32
    return %c0_i32, %c0_i32_0 : i32, i32
  }
  func.func @transform_7(%arg0: i32) -> (i32, i32) {
    %c0_i32 = arith.constant 0 : i32
    %c0_i32_0 = arith.constant 0 : i32
    return %arg0, %c0_i32 : i32, i32
  }
}

</mosaic_0001>

<llo_original>
// kernel: _expert_forward_jit.1
$region0: #{_expert_forward_jit.1}
  #allocation0 [shape = 'u32[]', space=smem, size = 0x4, offset = 0x4, fixed_abs, tag = 'smem constant byte address 0x4 - core index']
  #allocation1 [shape = 'u32[72,128]{1,0:T(1,128)}', space=vmem, size = 0x9000, scoped, tag = 'internal scratch']
  %s0 = inlined_call_operand.vmem [shape: f32[8,128], index: 0, kind: input, shape index: {}]
  %s1 = inlined_call_operand.hbm [shape: bf16[128,128], index: 1, kind: input, shape index: {}]
  %s2 = inlined_call_operand.vmem [shape: f32[1,128], index: 2, kind: input, shape index: {}]
  %s3 = inlined_call_operand.hbm [shape: bf16[128,128], index: 3, kind: input, shape index: {}]
  %s4 = inlined_call_operand.vmem [shape: f32[1,128], index: 4, kind: input, shape index: {}]
  %s5 = inlined_call_operand.hbm [shape: bf16[128,128], index: 5, kind: input, shape index: {}]
  %s6 = inlined_call_operand.vmem [shape: f32[1,128], index: 6, kind: input, shape index: {}]
  %s7 = inlined_call_operand.hbm [shape: f32[8,128], index: 7, kind: output, shape index: {}]
  %s8 = sld [smem:[#allocation0]]
  $region50: #{_expert_forward_jit.1} parent=0
    _
  %s10 = ssub.s32 1, %s8
  %s11 = scalar_select 0, %s10, %s8
  $region1: #{_expert_forward_jit.1} parent=0
    #allocation2 [shape = 'u8[32768]{0}', space=vmem, size = 0x8000, scoped, tag = 'input window, operand 1, single buffered']
    #allocation3 [shape = 's32[1]{0}', space=sflag, size = 0x4, scoped, tag = 'scoped memory for _expert_forward_jit.1']
    #allocation4 [shape = 's32[1]{0}', space=sflag, size = 0x4, scoped, tag = 'scoped memory for _expert_forward_jit.1']
    #allocation5 [shape = 'u8[32768]{0}', space=vmem, size = 0x8000, scoped, tag = 'input window, operand 3, single buffered']
    #allocation6 [shape = 's32[1]{0}', space=sflag, size = 0x4, scoped, tag = 'scoped memory for _expert_forward_jit.1']
    #allocation7 [shape = 'u8[32768]{0}', space=vmem, size = 0x8000, scoped, tag = 'input window, operand 5, single buffered']
    #allocation8 [shape = 'u8[4096]{0}', space=vmem, size = 0x1000, scoped, tag = 'output window, operand 0, single buffered']
    %12 = vsyncpa [#allocation3], 0
    %13 = vsyncpa [#allocation6], 0
    %14 = vsyncpa [#allocation4], 0
    // Predicated region
    $region2: #{_expert_forward_jit.1} parent=1 // pred_check
      _
    $region3: #{_expert_forward_jit.1} parent=1 // pred_check_branch
      %16 = sbr.rel (0) target = $region5
    $region4: #{_expert_forward_jit.1} parent=1 // pred_region
      _
    $region5: #{_expert_forward_jit.1} parent=1 // pred_fallthru
      _
    // Predicated region
    $region6: #{_expert_forward_jit.1} parent=1 // pred_check
      _
    $region7: #{_expert_forward_jit.1} parent=1 // pred_check_branch
      %18 = sbr.rel (0) target = $region9
    $region8: #{_expert_forward_jit.1} parent=1 // pred_region
      %20 = vsyncadd [#allocation3], 0
      %s21 = sshll.u32 %s1, 4
      %s22 = int_to_ptr.hbm [resolvable:$true] %s21
      %s23 = sshll.u32 [#allocation2], 4
      %s24 = int_to_ptr.vmem [resolvable:$true] %s23
      %29 = dma.hbm_to_vmem [thread:$0]  %s22, 1024, %s24, [#allocation3], 64, 64, 4
    $region9: #{_expert_forward_jit.1} parent=1 // pred_fallthru
      _
    // Predicated region
    $region10: #{_expert_forward_jit.1} parent=1 // pred_check
      _
    $region11: #{_expert_forward_jit.1} parent=1 // pred_check_branch
      %31 = sbr.rel (0) target = $region13
    $region12: #{_expert_forward_jit.1} parent=1 // pred_region
      _
    $region13: #{_expert_forward_jit.1} parent=1 // pred_fallthru
      _
    // Predicated region
    $region14: #{_expert_forward_jit.1} parent=1 // pred_check
      _
    $region15: #{_expert_forward_jit.1} parent=1 // pred_check_branch
      %33 = sbr.rel (0) target = $region17
    $region16: #{_expert_forward_jit.1} parent=1 // pred_region
      %35 = vsyncadd [#allocation6], 0
      %s36 = sshll.u32 %s3, 4
      %s37 = int_to_ptr.hbm [resolvable:$true] %s36
      %s38 = sshll.u32 [#allocation5], 4
      %s39 = int_to_ptr.vmem [resolvable:$true] %s38
      %44 = dma.hbm_to_vmem [thread:$0]  %s37, 1024, %s39, [#allocation6], 64, 64, 4
    $region17: #{_expert_forward_jit.1} parent=1 // pred_fallthru
      _
    // Predicated region
    $region18: #{_expert_forward_jit.1} parent=1 // pred_check
      _
    $region19: #{_expert_forward_jit.1} parent=1 // pred_check_branch
      %46 = sbr.rel (0) target = $region21
    $region20: #{_expert_forward_jit.1} parent=1 // pred_region
      _
    $region21: #{_expert_forward_jit.1} parent=1 // pred_fallthru
      _
    // Predicated region
    $region22: #{_expert_forward_jit.1} parent=1 // pred_check
      _
    $region23: #{_expert_forward_jit.1} parent=1 // pred_check_branch
      %48 = sbr.rel (0) target = $region25
    $region24: #{_expert_forward_jit.1} parent=1 // pred_region
      %50 = vsyncadd [#allocation6], 0
      %s51 = sshll.u32 %s5, 4
      %s52 = int_to_ptr.hbm [resolvable:$true] %s51
      %s53 = sshll.u32 [#allocation7], 4
      %s54 = int_to_ptr.vmem [resolvable:$true] %s53
      %59 = dma.hbm_to_vmem [thread:$0]  %s52, 1024, %s54, [#allocation6], 64, 64, 4
    $region25: #{_expert_forward_jit.1} parent=1 // pred_fallthru
      _
    // Predicated region
    $region26: #{_expert_forward_jit.1} parent=1 // pred_check
      _
    $region27: #{_expert_forward_jit.1} parent=1 // pred_check_branch
      %61 = sbr.rel (0) target = $region29
    $region28: #{_expert_forward_jit.1} parent=1 // pred_region
      _
    $region29: #{_expert_forward_jit.1} parent=1 // pred_fallthru
      _
    // Predicated region
    $region30: #{_expert_forward_jit.1} parent=1 // pred_check
      _
    $region31: #{_expert_forward_jit.1} parent=1 // pred_check_branch
      %63 = sbr.rel (0) target = $region33
    $region32: #{_expert_forward_jit.1} parent=1 // pred_region
      %65 = dma.done [#allocation3], 1024
    $region33: #{_expert_forward_jit.1} parent=1 // pred_fallthru
      _
    // Predicated region
    $region34: #{_expert_forward_jit.1} parent=1 // pred_check
      _
    $region35: #{_expert_forward_jit.1} parent=1 // pred_check_branch
      %67 = sbr.rel (0) target = $region37
    $region36: #{_expert_forward_jit.1} parent=1 // pred_region
      %69 = dma.done [#allocation6], 1024
    $region37: #{_expert_forward_jit.1} parent=1 // pred_fallthru
      _
    // Predicated region
    $region38: #{_expert_forward_jit.1} parent=1 // pred_check
      _
    $region39: #{_expert_forward_jit.1} parent=1 // pred_check_branch
      %71 = sbr.rel (0) target = $region41
    $region40: #{_expert_forward_jit.1} parent=1 // pred_region
      %73 = dma.done [#allocation6], 1024
    $region41: #{_expert_forward_jit.1} parent=1 // pred_fallthru
      _
    %v74 = vld [vmem:[%s0] sm:$0xff]
    %v75 = vpack.c.bf16 %v74, %v74
    %v76 = vld [vmem:[#allocation2] sm:$0xf]
    %v77 = vld [vmem:[#allocation2 + $0x4] sm:$0xf]
    %v78 = vld [vmem:[#allocation2 + $0x8] sm:$0xf]
    %v79 = vld [vmem:[#allocation2 + $0xc] sm:$0xf]
    %v80 = vld [vmem:[#allocation2 + $0x10] sm:$0xf]
    %v81 = vld [vmem:[#allocation2 + $0x14] sm:$0xf]
    %v82 = vld [vmem:[#allocation2 + $0x18] sm:$0xf]
    %v83 = vld [vmem:[#allocation2 + $0x1c] sm:$0xf]
    %v84 = vld [vmem:[#allocation2 + $0x20] sm:$0xf]
    %v85 = vld [vmem:[#allocation2 + $0x24] sm:$0xf]
    %v86 = vld [vmem:[#allocation2 + $0x28] sm:$0xf]
    %v87 = vld [vmem:[#allocation2 + $0x2c] sm:$0xf]
    %v88 = vld [vmem:[#allocation2 + $0x30] sm:$0xf]
    %v89 = vld [vmem:[#allocation2 + $0x34] sm:$0xf]
    %v90 = vld [vmem:[#allocation2 + $0x38] sm:$0xf]
    %v91 = vld [vmem:[#allocation2 + $0x3c] sm:$0xf]
    %v92 = vld [vmem:[%s2] sm:$0x1]
    %v94 = vperm.slane %v92, 0
    %v112 = vunpack.c.l.b16 %v76
    %v113 = vunpack.c.l.b16 %v77
    %v114 = vunpack.c.l.b16 %v78
    %v115 = vunpack.c.l.b16 %v79
    %v116 = vunpack.c.l.b16 %v80
    %v117 = vunpack.c.l.b16 %v81
    %v118 = vunpack.c.l.b16 %v82
    %v119 = vunpack.c.l.b16 %v83
    %v120 = vunpack.c.l.b16 %v84
    %v121 = vunpack.c.l.b16 %v85
    %v122 = vunpack.c.l.b16 %v86
    %v123 = vunpack.c.l.b16 %v87
    %v124 = vunpack.c.l.b16 %v88
    %v125 = vunpack.c.l.b16 %v89
    %v126 = vunpack.c.l.b16 %v90
    %v127 = vunpack.c.l.b16 %v91
    %v128 = vpack.c.b16 %v113, %v112
    %v129 = vpack.c.b16 %v115, %v114
    %v130 = vpack.c.b16 %v117, %v116
    %v131 = vpack.c.b16 %v119, %v118
    %v132 = vpack.c.b16 %v121, %v120
    %v133 = vpack.c.b16 %v123, %v122
    %v134 = vpack.c.b16 %v125, %v124
    %v135 = vpack.c.b16 %v127, %v126
    %144 = vmatpush.bf16.msra.mxu0 %v135
    %145 = vmatpush.bf16.msra.mxu0 %v134
    %146 = vmatpush.bf16.msra.mxu0 %v133
    %147 = vmatpush.bf16.msra.mxu0 %v132
    %148 = vmatpush.bf16.msra.mxu0 %v131
    %149 = vmatpush.bf16.msra.mxu0 %v130
    %150 = vmatpush.bf16.msra.mxu0 %v129
    %151 = vmatpush.bf16.msra.mxu0 %v128
    %152 = vmatmul.bf16.gmra.mxu0 %v75
    %v153 = vpop.f32.mrf.mxu0
    %v154 = vadd.f32 %v94, %v153
    %v155 = vpop.f32.mrf.mxu0
    %156 = vdwg.mxu0
    %v157 = vmax.f32 %v154, 0.0
    %v158 = vpack.c.bf16 %v157, %v157
    %v159 = vld [vmem:[#allocation5] sm:$0xf]
    %v160 = vld [vmem:[#allocation5 + $0x4] sm:$0xf]
    %v161 = vld [vmem:[#allocation5 + $0x8] sm:$0xf]
    %v162 = vld [vmem:[#allocation5 + $0xc] sm:$0xf]
    %v163 = vld [vmem:[#allocation5 + $0x10] sm:$0xf]
    %v164 = vld [vmem:[#allocation5 + $0x14] sm:$0xf]
    %v165 = vld [vmem:[#allocation5 + $0x18] sm:$0xf]
    %v166 = vld [vmem:[#allocation5 + $0x1c] sm:$0xf]
    %v167 = vld [vmem:[#allocation5 + $0x20] sm:$0xf]
    %v168 = vld [vmem:[#allocation5 + $0x24] sm:$0xf]
    %v169 = vld [vmem:[#allocation5 + $0x28] sm:$0xf]
    %v170 = vld [vmem:[#allocation5 + $0x2c] sm:$0xf]
    %v171 = vld [vmem:[#allocation5 + $0x30] sm:$0xf]
    %v172 = vld [vmem:[#allocation5 + $0x34] sm:$0xf]
    %v173 = vld [vmem:[#allocation5 + $0x38] sm:$0xf]
    %v174 = vld [vmem:[#allocation5 + $0x3c] sm:$0xf]
    %v175 = vld [vmem:[%s4] sm:$0x1]
    %v177 = vperm.slane %v175, 0
    %v195 = vunpack.c.l.b16 %v159
    %v196 = vunpack.c.l.b16 %v160
    %v197 = vunpack.c.l.b16 %v161
    %v198 = vunpack.c.l.b16 %v162
    %v199 = vunpack.c.l.b16 %v163
    %v200 = vunpack.c.l.b16 %v164
    %v201 = vunpack.c.l.b16 %v165
    %v202 = vunpack.c.l.b16 %v166
    %v203 = vunpack.c.l.b16 %v167
    %v204 = vunpack.c.l.b16 %v168
    %v205 = vunpack.c.l.b16 %v169
    %v206 = vunpack.c.l.b16 %v170
    %v207 = vunpack.c.l.b16 %v171
    %v208 = vunpack.c.l.b16 %v172
    %v209 = vunpack.c.l.b16 %v173
    %v210 = vunpack.c.l.b16 %v174
    %v211 = vpack.c.b16 %v196, %v195
    %v212 = vpack.c.b16 %v198, %v197
    %v213 = vpack.c.b16 %v200, %v199
    %v214 = vpack.c.b16 %v202, %v201
    %v215 = vpack.c.b16 %v204, %v203
    %v216 = vpack.c.b16 %v206, %v205
    %v217 = vpack.c.b16 %v208, %v207
    %v218 = vpack.c.b16 %v210, %v209
    %227 = vmatpush.bf16.msra.mxu0 %v218
    %228 = vmatpush.bf16.msra.mxu0 %v217
    %229 = vmatpush.bf16.msra.mxu0 %v216
    %230 = vmatpush.bf16.msra.mxu0 %v215
    %231 = vmatpush.bf16.msra.mxu0 %v214
    %232 = vmatpush.bf16.msra.mxu0 %v213
    %233 = vmatpush.bf16.msra.mxu0 %v212
    %234 = vmatpush.bf16.msra.mxu0 %v211
    %235 = vmatmul.bf16.gmra.mxu0 %v158
    %v236 = vpop.f32.mrf.mxu0
    %v237 = vadd.f32 %v177, %v236
    %v238 = vpop.f32.mrf.mxu0
    %239 = vdwg.mxu0
    %v240 = vmax.f32 %v237, 0.0
    %v241 = vpack.c.bf16 %v240, %v240
    %v242 = vld [vmem:[#allocation7] sm:$0xf]
    %v243 = vld [vmem:[#allocation7 + $0x4] sm:$0xf]
    %v244 = vld [vmem:[#allocation7 + $0x8] sm:$0xf]
    %v245 = vld [vmem:[#allocation7 + $0xc] sm:$0xf]
    %v246 = vld [vmem:[#allocation7 + $0x10] sm:$0xf]
    %v247 = vld [vmem:[#allocation7 + $0x14] sm:$0xf]
    %v248 = vld [vmem:[#allocation7 + $0x18] sm:$0xf]
    %v249 = vld [vmem:[#allocation7 + $0x1c] sm:$0xf]
    %v250 = vld [vmem:[#allocation7 + $0x20] sm:$0xf]
    %v251 = vld [vmem:[#allocation7 + $0x24] sm:$0xf]
    %v252 = vld [vmem:[#allocation7 + $0x28] sm:$0xf]
    %v253 = vld [vmem:[#allocation7 + $0x2c] sm:$0xf]
    %v254 = vld [vmem:[#allocation7 + $0x30] sm:$0xf]
    %v255 = vld [vmem:[#allocation7 + $0x34] sm:$0xf]
    %v256 = vld [vmem:[#allocation7 + $0x38] sm:$0xf]
    %v257 = vld [vmem:[#allocation7 + $0x3c] sm:$0xf]
    %v258 = vld [vmem:[%s6] sm:$0x1]
    %v260 = vperm.slane %v258, 0
    %v278 = vunpack.c.l.b16 %v242
    %v279 = vunpack.c.l.b16 %v243
    %v280 = vunpack.c.l.b16 %v244
    %v281 = vunpack.c.l.b16 %v245
    %v282 = vunpack.c.l.b16 %v246
    %v283 = vunpack.c.l.b16 %v247
    %v284 = vunpack.c.l.b16 %v248
    %v285 = vunpack.c.l.b16 %v249
    %v286 = vunpack.c.l.b16 %v250
    %v287 = vunpack.c.l.b16 %v251
    %v288 = vunpack.c.l.b16 %v252
    %v289 = vunpack.c.l.b16 %v253
    %v290 = vunpack.c.l.b16 %v254
    %v291 = vunpack.c.l.b16 %v255
    %v292 = vunpack.c.l.b16 %v256
    %v293 = vunpack.c.l.b16 %v257
    %v294 = vpack.c.b16 %v279, %v278
    %v295 = vpack.c.b16 %v281, %v280
    %v296 = vpack.c.b16 %v283, %v282
    %v297 = vpack.c.b16 %v285, %v284
    %v298 = vpack.c.b16 %v287, %v286
    %v299 = vpack.c.b16 %v289, %v288
    %v300 = vpack.c.b16 %v291, %v290
    %v301 = vpack.c.b16 %v293, %v292
    %310 = vmatpush.bf16.msra.mxu0 %v301
    %311 = vmatpush.bf16.msra.mxu0 %v300
    %312 = vmatpush.bf16.msra.mxu0 %v299
    %313 = vmatpush.bf16.msra.mxu0 %v298
    %314 = vmatpush.bf16.msra.mxu0 %v297
    %315 = vmatpush.bf16.msra.mxu0 %v296
    %316 = vmatpush.bf16.msra.mxu0 %v295
    %317 = vmatpush.bf16.msra.mxu0 %v294
    %318 = vmatmul.bf16.gmra.mxu0 %v241
    %v319 = vpop.f32.mrf.mxu0
    %v320 = vadd.f32 %v260, %v319
    %v321 = vpop.f32.mrf.mxu0
    %322 = vdwg.mxu0
    %v323 = vlaneseq
    %v324 = vand.u32 %v323, 127
    %vm325 = vcmp.lt.s32.totalorder %v324, 16
    %v326 = vsel %vm325, %v320, -1e+30
    %327 = vmax.xlane.f32.xlu0 %v326
    %v328 = vpop.xlane.xlu0 %327
    %v329 = vsub.f32 %v326, %v328
    %v330 = vmul.f32 %v329, 1.442695
    %v331 = vpow.pop %v330
    %332 = vadd.xlane.f32.xlu0 %v331
    %v333 = vpop.xlane.xlu0 %332
    %v334 = vrcp.pop %v333
    %v335 = vmul.f32 %v333, %v334
    %v336 = vsub.f32 1.0, %v335
    %v337 = vmul.f32 %v334, %v336
    %v338 = vadd.f32 %v334, %v337
    %vm339 = vweird.f32 %v333
    %vm340 = vweird.f32 %v334
    %vm341 = vmor %vm339, %vm340
    %v342 = vsel %vm341, %v334, %v338
    %v343 = vand.u32 2147483647, %v333
    %vm344 = vcmp.eq.f32.partialorder %v343, 8.507059e+37
    %v345 = vand.u32 %v333, 2147483648
    %v346 = vor.u32 1.1754944e-38, %v345
    %v347 = vsel %vm344, %v346, %v342
    %v348 = vmul.f32 %v331, %v347
    %349 = vst [vmem:[#allocation8] sm:$0xff] %v348
    // Predicated region
    $region42: #{_expert_forward_jit.1} parent=1 // pred_check
      _
    $region43: #{_expert_forward_jit.1} parent=1 // pred_check_branch
      %351 = sbr.rel (0) target = $region45
    $region44: #{_expert_forward_jit.1} parent=1 // pred_region
      %353 = vsyncadd [#allocation4], 0
      %s355 = sshll.u32 [#allocation8], 4
      %s356 = int_to_ptr.vmem [resolvable:$true] %s355
      %s357 = sshll.u32 %s7, 4
      %s358 = int_to_ptr.hbm [resolvable:$true] %s357
      %360 = dma.vmem_to_hbm [thread:$0]  %s356, 128, %s358, [#allocation4]
    $region45: #{_expert_forward_jit.1} parent=1 // pred_fallthru
      _
    // Predicated region
    $region46: #{_expert_forward_jit.1} parent=1 // pred_check
      _
    $region47: #{_expert_forward_jit.1} parent=1 // pred_check_branch
      %362 = sbr.rel (0) target = $region49
    $region48: #{_expert_forward_jit.1} parent=1 // pred_region
      %364 = dma.done [#allocation4], 128
    $region49: #{_expert_forward_jit.1} parent=1 // pred_fallthru
      _
    %365 = vsyncpa [#allocation3], 1
    %366 = vsyncpa [#allocation6], 1
    %367 = vsyncpa [#allocation4], 1

</llo_original>
